<compile_context>
chip_gen: v5e
topology: v5e:2x2
jax: 0.10.0
libtpu: 0.0.40
codegen_flags: <defaults>
</compile_context>

<pallas_src>
import jax
import jax.numpy as jnp
from jax.experimental import pallas as pl
from jax.experimental.pallas import tpu as pltpu


def _round_up(x, m):
    return (x + m - 1) // m * m


def nn_layer_kernel(x_ref, w_ref, gamma_ref, beta_ref, o_ref, acc_ref):
    k = pl.program_id(1)

    @pl.when(k == 0)
    def _init():
        acc_ref[...] = jnp.zeros_like(acc_ref)

    # Linear (no bias -- it cancels under training-mode BatchNorm): MXU matmul,
    # f32 accumulation in VMEM scratch across the K grid axis.
    acc_ref[...] += jnp.dot(x_ref[...], w_ref[...],
                            preferred_element_type=jnp.float32)

    @pl.when(k == pl.num_programs(1) - 1)
    def _epilogue():
        h = acc_ref[...]
        n_rows = h.shape[0]
        inv_n = jnp.float32(1.0 / n_rows)            # compile-time constant
        # BatchNorm1d (training mode): biased batch statistics over the batch
        # axis, then affine transform with gamma/beta.
        mean = jnp.sum(h, axis=0, keepdims=True) * inv_n
        centered = h - mean
        var = jnp.sum(centered * centered, axis=0, keepdims=True) * inv_n
        h_norm = centered * jax.lax.rsqrt(var + jnp.float32(1e-5))
        y = h_norm * gamma_ref[...] + beta_ref[...]
        # ReLU activation, lane-dense store (tile_out is a multiple of 128).
        o_ref[...] = jnp.maximum(y, 0.0).astype(o_ref.dtype)


def nn_layer_forward(x, w, gamma, beta, *, tile_out=None, tile_k=None):
    """Fused Linear -> BatchNorm1d(train) -> ReLU.

    x: (N, inp), w: (inp, out) (transpose of PyTorch Linear.weight),
    gamma/beta: (1, out).  The Linear bias is intentionally not an argument:
    it is mathematically a no-op under training-mode BatchNorm.
    """
    N, inp = x.shape
    out = w.shape[1]

    # Lane-dense (multiple-of-128) feature tiles; K tiles multiple of 128.
    # Caps keep per-tile VMEM modest enough for v7x's smaller budget while
    # still MXU-friendly on v5e/v6e.
    if tile_out is None:
        tile_out = min(256, _round_up(out, 128))
    if tile_k is None:
        tile_k = min(512, _round_up(inp, 128))

    inp_p = _round_up(inp, tile_k)
    out_p = _round_up(out, tile_out)

    # Zero-pad to tile multiples (exact: zeros contribute nothing to the dot;
    # padded BN columns have gamma=beta=0 and stay finite).
    x_p = x if inp_p == inp else jnp.pad(x, ((0, 0), (0, inp_p - inp)))
    w_p = w if (inp_p == inp and out_p == out) else jnp.pad(
        w, ((0, inp_p - inp), (0, out_p - out)))
    gamma_p = gamma if out_p == out else jnp.pad(gamma, ((0, 0), (0, out_p - out)))
    beta_p = beta if out_p == out else jnp.pad(beta, ((0, 0), (0, out_p - out)))

    grid = (out_p // tile_out, inp_p // tile_k)

    cost = pl.CostEstimate(
        flops=2 * N * inp_p * out_p,
        transcendentals=out_p,
        bytes_accessed=4 * (N * inp_p + inp_p * out_p + 2 * out_p + N * out_p),
    )

    y_p = pl.pallas_call(
        nn_layer_kernel,
        out_shape=jax.ShapeDtypeStruct((N, out_p), x.dtype),
        grid_spec=pltpu.PrefetchScalarGridSpec(
            num_scalar_prefetch=0,
            grid=grid,
            in_specs=[
                # x: full batch, K-tiled (reused across the out-tile axis).
                pl.BlockSpec((N, tile_k), lambda j, k: (0, k)),
                # weight: (tile_k, tile_out) streamed from HBM, pipelined.
                pl.BlockSpec((tile_k, tile_out), lambda j, k: (k, j)),
                # gamma / beta: per-feature tiles.
                pl.BlockSpec((1, tile_out), lambda j, k: (0, j)),
                pl.BlockSpec((1, tile_out), lambda j, k: (0, j)),
            ],
            out_specs=pl.BlockSpec((N, tile_out), lambda j, k: (0, j)),
            scratch_shapes=[pltpu.VMEM((N, tile_out), jnp.float32)],
        ),
        compiler_params=pltpu.CompilerParams(
            dimension_semantics=("parallel", "arbitrary"),
        ),
        cost_estimate=cost,
    )(x_p, w_p, gamma_p, beta_p)

    return y_p[:, :out] if out_p != out else y_p


def reference_forward(x, w, b, gamma, beta):
    """Pure-JAX reference mirroring PyTorch Linear->BatchNorm1d(train)->ReLU
    (including the Linear bias, which the kernel drops since it cancels)."""
    h = x @ w + b
    mean = jnp.mean(h, axis=0, keepdims=True)
    var = jnp.mean((h - mean) ** 2, axis=0, keepdims=True)
    h_norm = (h - mean) / jnp.sqrt(var + 1e-5)
    return jnp.maximum(h_norm * gamma + beta, 0.0)


if __name__ == "__main__":
    # Small shapes consistent with the module: NN_layer(inp=32, out=64) on a
    # batch of 8 vectors.
    N, INP, OUT = 8, 32, 64

    key = jax.random.PRNGKey(0)
    kx, kw, kb = jax.random.split(key, 3)

    x = jax.random.normal(kx, (N, INP), dtype=jnp.float32)

    # PyTorch Linear default init: U(-1/sqrt(inp), 1/sqrt(inp)).
    bound = 1.0 / float(INP) ** 0.5
    w = jax.random.uniform(kw, (INP, OUT), dtype=jnp.float32,
                           minval=-bound, maxval=bound)
    b = jax.random.uniform(kb, (1, OUT), dtype=jnp.float32,
                           minval=-bound, maxval=bound)
    # BatchNorm1d default affine params.
    gamma = jnp.ones((1, OUT), dtype=jnp.float32)
    beta = jnp.zeros((1, OUT), dtype=jnp.float32)

    out = jax.block_until_ready(nn_layer_forward(x, w, gamma, beta))

    ref = reference_forward(x, w, b, gamma, beta)
    assert out.shape == (N, OUT)
    assert jnp.allclose(out, ref, atol=1e-5, rtol=1e-5), "mismatch vs reference"

    print("KERNEL_OK")
</pallas_src>

<mosaic_0001>
module attributes {stable_mosaic.version = 11 : i64} {
  func.func @nn_layer_kernel(%arg0: i32, %arg1: i32, %arg2: memref<8x128xf32, #tpu.memory_space<vmem>>, %arg3: memref<128x128xf32, #tpu.memory_space<vmem>>, %arg4: memref<1x128xf32, #tpu.memory_space<vmem>>, %arg5: memref<1x128xf32, #tpu.memory_space<vmem>>, %arg6: memref<8x128xf32, #tpu.memory_space<vmem>>, %arg7: memref<8x128xf32, #tpu.memory_space<vmem>>) attributes {dimension_semantics = [#tpu.dimension_semantics<parallel>, #tpu.dimension_semantics<arbitrary>], iteration_bounds = array<i64: 1, 1>, scalar_prefetch = 0 : i64, scratch_operands = 1 : i64, tpu.core_type = #tpu.core_type<tc>, window_params = [{transform_indices = @transform_0, window_bounds = array<i64: 8, 128>}, {transform_indices = @transform_1, window_bounds = array<i64: 128, 128>}, {transform_indices = @transform_2, window_bounds = array<i64: 1, 128>}, {transform_indices = @transform_3, window_bounds = array<i64: 1, 128>}, {transform_indices = @transform_4, window_bounds = array<i64: 8, 128>}]} {
    %c0_i32 = arith.constant 0 : i32
    %0 = arith.cmpi eq, %arg1, %c0_i32 : i32
    %1 = arith.extui %0 : i1 to i32
    %c0_i32_0 = arith.constant 0 : i32
    %2 = arith.cmpi ne, %1, %c0_i32_0 : i32
    scf.if %2 {
      %cst_10 = arith.constant 0.000000e+00 : f32
      %12 = vector.broadcast %cst_10 : f32 to vector<8x128xf32>
      %c0_11 = arith.constant 0 : index
      %c0_12 = arith.constant 0 : index
      %13 = vector.load %arg7[%c0_11, %c0_12] : memref<8x128xf32, #tpu.memory_space<vmem>>, vector<8x128xf32>
      tpu.vector_store %arg7[%c0_11, %c0_12], %12 {strides = array<i32>} : memref<8x128xf32, #tpu.memory_space<vmem>>, vector<8x128xf32>,
    } else {
    }
    %c0 = arith.constant 0 : index
    %c0_1 = arith.constant 0 : index
    %3 = vector.load %arg7[%c0, %c0_1] : memref<8x128xf32, #tpu.memory_space<vmem>>, vector<8x128xf32>
    %c0_2 = arith.constant 0 : index
    %c0_3 = arith.constant 0 : index
    %4 = vector.load %arg2[%c0_2, %c0_3] : memref<8x128xf32, #tpu.memory_space<vmem>>, vector<8x128xf32>
    %c0_4 = arith.constant 0 : index
    %c0_5 = arith.constant 0 : index
    %5 = vector.load %arg3[%c0_4, %c0_5] : memref<128x128xf32, #tpu.memory_space<vmem>>, vector<128x128xf32>
    %cst = arith.constant dense<0.000000e+00> : vector<8x128xf32>
    %6 = tpu.matmul %4, %5, %cst {dimension_numbers = #tpu.dot_dimension_numbers<[1], [0], [0], [1], [0, 0, 1, 1], [], []>} : vector<8x128xf32>, vector<128x128xf32>, vector<8x128xf32> -> vector<8x128xf32>
    %7 = arith.addf %3, %6 : vector<8x128xf32>
    %c0_6 = arith.constant 0 : index
    %c0_7 = arith.constant 0 : index
    %8 = vector.load %arg7[%c0_6, %c0_7] : memref<8x128xf32, #tpu.memory_space<vmem>>, vector<8x128xf32>
    tpu.vector_store %arg7[%c0_6, %c0_7], %7 {strides = array<i32>} : memref<8x128xf32, #tpu.memory_space<vmem>>, vector<8x128xf32>,
    %c0_i32_8 = arith.constant 0 : i32
    %9 = arith.cmpi eq, %arg1, %c0_i32_8 : i32
    %10 = arith.extui %9 : i1 to i32
    %c0_i32_9 = arith.constant 0 : i32
    %11 = arith.cmpi ne, %10, %c0_i32_9 : i32
    scf.if %11 {
      %c0_10 = arith.constant 0 : index
      %c0_11 = arith.constant 0 : index
      %12 = vector.load %arg7[%c0_10, %c0_11] : memref<8x128xf32, #tpu.memory_space<vmem>>, vector<8x128xf32>
      %cst_12 = arith.constant dense<0.000000e+00> : vector<128xf32>
      %13 = vector.multi_reduction <add>, %12, %cst_12 [0] : vector<8x128xf32> to vector<128xf32>
      %14 = vector.shape_cast %13 : vector<128xf32> to vector<1x128xf32>
      %cst_13 = arith.constant 1.250000e-01 : f32
      %15 = vector.broadcast %cst_13 : f32 to vector<1x128xf32>
      %16 = arith.mulf %14, %15 : vector<1x128xf32>
      %17 = vector.broadcast %16 : vector<1x128xf32> to vector<8x128xf32>
      %18 = arith.subf %12, %17 : vector<8x128xf32>
      %19 = arith.mulf %18, %18 : vector<8x128xf32>
      %cst_14 = arith.constant dense<0.000000e+00> : vector<128xf32>
      %20 = vector.multi_reduction <add>, %19, %cst_14 [0] : vector<8x128xf32> to vector<128xf32>
      %21 = vector.shape_cast %20 : vector<128xf32> to vector<1x128xf32>
      %cst_15 = arith.constant 1.250000e-01 : f32
      %22 = vector.broadcast %cst_15 : f32 to vector<1x128xf32>
      %23 = arith.mulf %21, %22 : vector<1x128xf32>
      %cst_16 = arith.constant 9.99999974E-6 : f32
      %24 = vector.broadcast %cst_16 : f32 to vector<1x128xf32>
      %25 = arith.addf %23, %24 : vector<1x128xf32>
      %26 = math.rsqrt %25 : vector<1x128xf32>
      %27 = vector.broadcast %26 : vector<1x128xf32> to vector<8x128xf32>
      %28 = arith.mulf %18, %27 : vector<8x128xf32>
      %c0_17 = arith.constant 0 : index
      %c0_18 = arith.constant 0 : index
      %29 = vector.load %arg4[%c0_17, %c0_18] : memref<1x128xf32, #tpu.memory_space<vmem>>, vector<1x128xf32>
      %30 = vector.broadcast %29 : vector<1x128xf32> to vector<8x128xf32>
      %31 = arith.mulf %28, %30 : vector<8x128xf32>
      %c0_19 = arith.constant 0 : index
      %c0_20 = arith.constant 0 : index
      %32 = vector.load %arg5[%c0_19, %c0_20] : memref<1x128xf32, #tpu.memory_space<vmem>>, vector<1x128xf32>
      %33 = vector.broadcast %32 : vector<1x128xf32> to vector<8x128xf32>
      %34 = arith.addf %31, %33 : vector<8x128xf32>
      %cst_21 = arith.constant 0.000000e+00 : f32
      %35 = vector.broadcast %cst_21 : f32 to vector<8x128xf32>
      %36 = arith.maximumf %34, %35 : vector<8x128xf32>
      %c0_22 = arith.constant 0 : index
      %c0_23 = arith.constant 0 : index
      %37 = vector.load %arg6[%c0_22, %c0_23] : memref<8x128xf32, #tpu.memory_space<vmem>>, vector<8x128xf32>
      tpu.vector_store %arg6[%c0_22, %c0_23], %36 {strides = array<i32>} : memref<8x128xf32, #tpu.memory_space<vmem>>, vector<8x128xf32>,
    } else {
    }
    return
  }
  func.func @transform_0(%arg0: i32, %arg1: i32) -> (i32, i32) {
    %c0_i32 = arith.constant 0 : i32
    %c0_i32_0 = arith.constant 0 : i32
    return %c0_i32, %arg1 : i32, i32
  }
  func.func @transform_1(%arg0: i32, %arg1: i32) -> (i32, i32) {
    %c0_i32 = arith.constant 0 : i32
    return %arg1, %arg0 : i32, i32
  }
  func.func @transform_2(%arg0: i32, %arg1: i32) -> (i32, i32) {
    %c0_i32 = arith.constant 0 : i32
    %c0_i32_0 = arith.constant 0 : i32
    return %c0_i32, %arg0 : i32, i32
  }
  func.func @transform_3(%arg0: i32, %arg1: i32) -> (i32, i32) {
    %c0_i32 = arith.constant 0 : i32
    %c0_i32_0 = arith.constant 0 : i32
    return %c0_i32, %arg0 : i32, i32
  }
  func.func @transform_4(%arg0: i32, %arg1: i32) -> (i32, i32) {
    %c0_i32 = arith.constant 0 : i32
    %c0_i32_0 = arith.constant 0 : i32
    return %c0_i32, %arg0 : i32, i32
  }
}

</mosaic_0001>

<llo_original>
// kernel: tpu_custom_call.1
$region0: #{tpu_custom_call.1}
  #allocation0 [shape = 'u32[]', space=smem, size = 0x4, offset = 0x4, fixed_abs, tag = 'smem constant byte address 0x4 - core index']
  #allocation1 [shape = 'u32[72,128]{1,0:T(1,128)}', space=vmem, size = 0x9000, scoped, tag = 'internal scratch']
  #allocation2 [shape = 'f32[8,128]{1,0:T(8,128)}', space=vmem, size = 0x1000, scoped, tag = 'scratch operand']
  %s0 = inlined_call_operand.hbm [shape: f32[8,128], index: 0, kind: input, shape index: {}]
  %s1 = inlined_call_operand.hbm [shape: f32[128,128], index: 1, kind: input, shape index: {}]
  %s2 = inlined_call_operand.vmem [shape: f32[1,128], index: 2, kind: input, shape index: {}]
  %s3 = inlined_call_operand.vmem [shape: f32[1,128], index: 3, kind: input, shape index: {}]
  %s4 = inlined_call_operand.hbm [shape: f32[8,128], index: 4, kind: output, shape index: {}]
  %s5 = sld [smem:[#allocation0]]
  $region42: #{tpu_custom_call.1} parent=0
    _
  %s7 = ssub.s32 1, %s5
  %s8 = scalar_select 0, %s7, %s5
  $region1: #{tpu_custom_call.1} parent=0
    #allocation3 [shape = 'u8[4096]{0}', space=vmem, size = 0x1000, scoped, tag = 'input window, operand 0, single buffered']
    #allocation4 [shape = 's32[1]{0}', space=sflag, size = 0x4, scoped, tag = 'scoped memory for tpu_custom_call.1']
    #allocation5 [shape = 's32[1]{0}', space=sflag, size = 0x4, scoped, tag = 'scoped memory for tpu_custom_call.1']
    #allocation6 [shape = 'u8[65536]{0}', space=vmem, size = 0x10000, scoped, tag = 'input window, operand 1, single buffered']
    #allocation7 [shape = 's32[1]{0}', space=sflag, size = 0x4, scoped, tag = 'scoped memory for tpu_custom_call.1']
    #allocation8 [shape = 'u8[4096]{0}', space=vmem, size = 0x1000, scoped, tag = 'output window, operand 0, single buffered']
    %9 = vsyncpa [#allocation4], 0
    %10 = vsyncpa [#allocation7], 0
    %11 = vsyncpa [#allocation5], 0
    // Predicated region
    $region2: #{tpu_custom_call.1} parent=1 // pred_check
      _
    $region3: #{tpu_custom_call.1} parent=1 // pred_check_branch
      %13 = sbr.rel (0) target = $region5
    $region4: #{tpu_custom_call.1} parent=1 // pred_region
      %15 = vsyncadd [#allocation4], 0
      %s17 = sshll.u32 %s0, 4
      %s18 = int_to_ptr.hbm [resolvable:$true] %s17
      %s19 = sshll.u32 [#allocation3], 4
      %s20 = int_to_ptr.vmem [resolvable:$true] %s19
      %22 = dma.hbm_to_vmem [thread:$0]  %s18, 128, %s20, [#allocation4]
    $region5: #{tpu_custom_call.1} parent=1 // pred_fallthru
      _
    // Predicated region
    $region6: #{tpu_custom_call.1} parent=1 // pred_check
      _
    $region7: #{tpu_custom_call.1} parent=1 // pred_check_branch
      %24 = sbr.rel (0) target = $region9
    $region8: #{tpu_custom_call.1} parent=1 // pred_region
      %26 = vsyncadd [#allocation7], 0
      %s27 = sshll.u32 %s1, 4
      %s28 = int_to_ptr.hbm [resolvable:$true] %s27
      %s29 = sshll.u32 [#allocation6], 4
      %s30 = int_to_ptr.vmem [resolvable:$true] %s29
      %35 = dma.hbm_to_vmem [thread:$0]  %s28, 2048, %s30, [#allocation7], 128, 128, 8
    $region9: #{tpu_custom_call.1} parent=1 // pred_fallthru
      _
    // Predicated region
    $region10: #{tpu_custom_call.1} parent=1 // pred_check
      _
    $region11: #{tpu_custom_call.1} parent=1 // pred_check_branch
      %37 = sbr.rel (0) target = $region13
    $region12: #{tpu_custom_call.1} parent=1 // pred_region
      _
    $region13: #{tpu_custom_call.1} parent=1 // pred_fallthru
      _
    // Predicated region
    $region14: #{tpu_custom_call.1} parent=1 // pred_check
      _
    $region15: #{tpu_custom_call.1} parent=1 // pred_check_branch
      %39 = sbr.rel (0) target = $region17
    $region16: #{tpu_custom_call.1} parent=1 // pred_region
      _
    $region17: #{tpu_custom_call.1} parent=1 // pred_fallthru
      _
    // Predicated region
    $region18: #{tpu_custom_call.1} parent=1 // pred_check
      _
    $region19: #{tpu_custom_call.1} parent=1 // pred_check_branch
      %41 = sbr.rel (0) target = $region21
    $region20: #{tpu_custom_call.1} parent=1 // pred_region
      %43 = dma.done [#allocation4], 128
    $region21: #{tpu_custom_call.1} parent=1 // pred_fallthru
      _
    // Predicated region
    $region22: #{tpu_custom_call.1} parent=1 // pred_check
      _
    $region23: #{tpu_custom_call.1} parent=1 // pred_check_branch
      %45 = sbr.rel (0) target = $region25
    $region24: #{tpu_custom_call.1} parent=1 // pred_region
      %47 = dma.done [#allocation7], 2048
    $region25: #{tpu_custom_call.1} parent=1 // pred_fallthru
      _
    %p48 = scmp.eq.s32.totalorder 0, 0
    // Predicated region
    $region26: #{tpu_custom_call.1} parent=1 // pred_check
      %p49 = pneg %p48
    $region27: #{tpu_custom_call.1} parent=1 // pred_check_branch
      %51 = sbr.rel (%p49) target = $region29
    $region28: #{tpu_custom_call.1} parent=1 // pred_region
      %52 = vst [vmem:[#allocation2] sm:$0xff] 0.0
    $region29: #{tpu_custom_call.1} parent=1 // pred_fallthru
      _
    %v53 = vld [vmem:[#allocation2] sm:$0xff]
    %v54 = vld [vmem:[#allocation3] sm:$0xff]
    %v55 = vld [vmem:[#allocation6] sm:$0xff]
    %v56 = vld [vmem:[#allocation6 + $0x8] sm:$0xff]
    %v57 = vld [vmem:[#allocation6 + $0x10] sm:$0xff]
    %v58 = vld [vmem:[#allocation6 + $0x18] sm:$0xff]
    %v59 = vld [vmem:[#allocation6 + $0x20] sm:$0xff]
    %v60 = vld [vmem:[#allocation6 + $0x28] sm:$0xff]
    %v61 = vld [vmem:[#allocation6 + $0x30] sm:$0xff]
    %v62 = vld [vmem:[#allocation6 + $0x38] sm:$0xff]
    %v63 = vld [vmem:[#allocation6 + $0x40] sm:$0xff]
    %v64 = vld [vmem:[#allocation6 + $0x48] sm:$0xff]
    %v65 = vld [vmem:[#allocation6 + $0x50] sm:$0xff]
    %v66 = vld [vmem:[#allocation6 + $0x58] sm:$0xff]
    %v67 = vld [vmem:[#allocation6 + $0x60] sm:$0xff]
    %v68 = vld [vmem:[#allocation6 + $0x68] sm:$0xff]
    %v69 = vld [vmem:[#allocation6 + $0x70] sm:$0xff]
    %v70 = vld [vmem:[#allocation6 + $0x78] sm:$0xff]
    %71 = vmatpush.msra.mxu0 %v70
    %72 = vmatpush.msra.mxu0 %v69
    %73 = vmatpush.msra.mxu0 %v68
    %74 = vmatpush.msra.mxu0 %v67
    %75 = vmatpush.msra.mxu0 %v66
    %76 = vmatpush.msra.mxu0 %v65
    %77 = vmatpush.msra.mxu0 %v64
    %78 = vmatpush.msra.mxu0 %v63
    %79 = vmatpush.msra.mxu0 %v62
    %80 = vmatpush.msra.mxu0 %v61
    %81 = vmatpush.msra.mxu0 %v60
    %82 = vmatpush.msra.mxu0 %v59
    %83 = vmatpush.msra.mxu0 %v58
    %84 = vmatpush.msra.mxu0 %v57
    %85 = vmatpush.msra.mxu0 %v56
    %86 = vmatpush.msra.mxu0 %v55
    %87 = vmatmul.f32.gmra.mxu0 %v54
    %v88 = vpop.f32.mrf.mxu0
    %v89 = vadd.f32 0.0, %v88
    %90 = vdwg.mxu0
    %v91 = vadd.f32 %v53, %v89
    %92 = vst [vmem:[#allocation2] sm:$0xff] %v91
    // Predicated region
    $region30: #{tpu_custom_call.1} parent=1 // pred_check
      %p93 = pneg %p48
    $region31: #{tpu_custom_call.1} parent=1 // pred_check_branch
      %95 = sbr.rel (%p93) target = $region33
    $region32: #{tpu_custom_call.1} parent=1 // pred_region
      %v96 = vld [vmem:[#allocation2] sm:$0xff]
      %v97 = vrot.slane %v96, 4
      %v98 = vadd.f32 %v96, %v97
      %v99 = vrot.slane %v98, 2
      %v100 = vadd.f32 %v98, %v99
      %v101 = vrot.slane %v100, 1
      %v102 = vadd.f32 %v100, %v101
      %v103 = vmul.f32 %v102, 0.125
      %v104 = vsub.f32 %v96, %v103
      %v105 = vmul.f32 %v104, %v104
      %v106 = vrot.slane %v105, 4
      %v107 = vadd.f32 %v105, %v106
      %v108 = vrot.slane %v107, 2
      %v109 = vadd.f32 %v107, %v108
      %v110 = vrot.slane %v109, 1
      %v111 = vadd.f32 %v109, %v110
      %v112 = vmul.f32 %v111, 0.125
      %v113 = vadd.f32 %v112, 1e-05
      %v114 = vrsqrt.pop %v113
      %v115 = vmul.f32 %v114, %v113
      %v116 = vmul.f32 %v115, %v114
      %v117 = vmul.f32 0.5, %v116
      %v118 = vsub.f32 1.5, %v117
      %v119 = vmul.f32 %v114, %v118
      %vm120 = vweird.f32 %v113
      %vm121 = vweird.f32 %v114
      %vm122 = vmor %vm120, %vm121
      %v123 = vsel %vm122, %v114, %v119
      %v124 = vmul.f32 %v104, %v123
      %v125 = vld [vmem:[%s2] sm:$0x1]
      %v127 = vperm.slane %v125, 0
      %v129 = vmul.f32 %v124, %v127
      %v130 = vld [vmem:[%s3] sm:$0x1]
      %v132 = vperm.slane %v130, 0
      %v134 = vadd.f32 %v129, %v132
      %v135 = vmax.f32 %v134, 0.0
      %136 = vst [vmem:[#allocation8] sm:$0xff] %v135
    $region33: #{tpu_custom_call.1} parent=1 // pred_fallthru
      _
    // Predicated region
    $region34: #{tpu_custom_call.1} parent=1 // pred_check
      _
    $region35: #{tpu_custom_call.1} parent=1 // pred_check_branch
      %138 = sbr.rel (0) target = $region37
    $region36: #{tpu_custom_call.1} parent=1 // pred_region
      %140 = vsyncadd [#allocation5], 0
      %s142 = sshll.u32 [#allocation8], 4
      %s143 = int_to_ptr.vmem [resolvable:$true] %s142
      %s144 = sshll.u32 %s4, 4
      %s145 = int_to_ptr.hbm [resolvable:$true] %s144
      %147 = dma.vmem_to_hbm [thread:$0]  %s143, 128, %s145, [#allocation5]
    $region37: #{tpu_custom_call.1} parent=1 // pred_fallthru
      _
    // Predicated region
    $region38: #{tpu_custom_call.1} parent=1 // pred_check
      _
    $region39: #{tpu_custom_call.1} parent=1 // pred_check_branch
      %149 = sbr.rel (0) target = $region41
    $region40: #{tpu_custom_call.1} parent=1 // pred_region
      %151 = dma.done [#allocation5], 128
    $region41: #{tpu_custom_call.1} parent=1 // pred_fallthru
      _
    %152 = vsyncpa [#allocation4], 1
    %153 = vsyncpa [#allocation7], 1
    %154 = vsyncpa [#allocation5], 1

</llo_original>
